<compile_context>
chip_gen: v5e
topology: v5e:2x2
jax: 0.10.0
libtpu: 0.0.40
codegen_flags: <defaults>
</compile_context>

<pallas_src>
import functools

import jax
import jax.numpy as jnp
from jax import lax
from jax.experimental import pallas as pl
from jax.experimental.pallas import tpu as pltpu


def _softplus(x):
    # numerically stable softplus, matches F.softplus (beta=1)
    return jnp.maximum(x, 0.0) + jnp.log1p(jnp.exp(-jnp.abs(x)))


def _round_up(x, m):
    return (x + m - 1) // m * m


def _boundary_loss_kernel(x_ref, labels_ref, cent_ref, delta_ref,
                          partial_ref, delta_out_ref, *,
                          n_valid, tile_n, k_pad):
    i = pl.program_id(0)

    # delta = F.softplus(self.delta); padded lanes are never selected (labels < K)
    delta_sp = _softplus(delta_ref[...])                      # (1, k_pad)
    delta_out_ref[...] = delta_sp                             # lane-dense (1, 128) store

    # Pre-normalize the (small) centroid table: O(K*D) instead of O(N*D).
    cent = cent_ref[...]                                      # (k_pad, D_pad)
    norm_sq = jnp.sum(cent * cent, axis=1, keepdims=True)     # (k_pad, 1)
    inv_norm = lax.rsqrt(jnp.maximum(norm_sq, 1e-30))         # guards zero-padded rows
    cent_n = cent * inv_norm

    # One MXU matmul contracting over the large dim D: sim[n,k] = <x_n, c_k/||c_k||>
    x = x_ref[...]                                            # (tile_n, D_pad)
    sim = jnp.einsum("nd,kd->nk", x, cent_n,
                     preferred_element_type=jnp.float32)      # (tile_n, k_pad)

    # In-kernel one-hot from int32 labels selects sim[label] + delta[label].
    labels = labels_ref[...]                                  # (tile_n, 1) int32
    ids = lax.broadcasted_iota(jnp.int32, (tile_n, k_pad), 1)
    onehot = labels == ids                                    # (tile_n, k_pad) bool
    sel = jnp.sum(jnp.where(onehot, sim + delta_sp, 0.0),
                  axis=1, keepdims=True)                      # (tile_n, 1)

    # pos_loss.mean() + neg_loss.mean() == mean(|euc - d|), euc - d = 1 - sel.
    rows = i * tile_n + lax.broadcasted_iota(jnp.int32, (tile_n, 1), 0)
    valid = rows < n_valid                                    # mask N-padding rows
    absdiff = jnp.where(valid, jnp.abs(1.0 - sel), 0.0)

    psum = jnp.sum(absdiff, keepdims=True)                    # (1, 1)
    partial_ref[...] = jnp.broadcast_to(psum, (1, k_pad))     # lane-dense (1, 128) store


def boundary_loss(pooled_output, centroids, labels, delta_param, *, tile_n=512):
    """Returns (loss scalar, softplus(delta) of shape (num_delta,))."""
    n, d = pooled_output.shape
    k = centroids.shape[0]
    n_delta = delta_param.shape[0]
    assert k <= n_delta, "labels must index into the 20-entry delta parameter"

    f32 = jnp.float32
    d_pad = _round_up(d, 128)                   # lane dim of x / centroids
    k_pad = _round_up(max(k, n_delta), 128)     # lane dim of sim / one-hot / delta
    tile_n = min(tile_n, _round_up(n, 8))       # keep tiles well under scoped VMEM (v7x: 32 MiB)
    n_pad = _round_up(n, tile_n)
    num_tiles = n_pad // tile_n

    # Zero-padding is exact for the matmul / one-hot select; padded rows are masked.
    x = jnp.pad(pooled_output.astype(f32), ((0, n_pad - n), (0, d_pad - d)))
    cents = jnp.pad(centroids.astype(f32), ((0, k_pad - k), (0, d_pad - d)))
    lab = jnp.pad(labels.astype(jnp.int32), (0, n_pad - n)).reshape(n_pad, 1)
    delta2d = jnp.pad(delta_param.astype(f32), (0, k_pad - n_delta)).reshape(1, k_pad)

    kernel = functools.partial(_boundary_loss_kernel,
                               n_valid=n, tile_n=tile_n, k_pad=k_pad)

    partials, delta_tiles = pl.pallas_call(
        kernel,
        out_shape=(
            jax.ShapeDtypeStruct((num_tiles, k_pad), f32),   # per-tile partial sums
            jax.ShapeDtypeStruct((num_tiles, k_pad), f32),   # per-tile softplus(delta)
        ),
        grid=(num_tiles,),
        in_specs=[
            pl.BlockSpec((tile_n, d_pad), lambda i: (i, 0)),   # x      (streamed over N)
            pl.BlockSpec((tile_n, 1), lambda i: (i, 0)),       # labels (streamed over N)
            pl.BlockSpec((k_pad, d_pad), lambda i: (0, 0)),    # centroids (resident)
            pl.BlockSpec((1, k_pad), lambda i: (0, 0)),        # delta     (resident)
        ],
        out_specs=(
            pl.BlockSpec((1, k_pad), lambda i: (i, 0)),
            pl.BlockSpec((1, k_pad), lambda i: (i, 0)),
        ),
        compiler_params=pltpu.CompilerParams(
            dimension_semantics=("parallel",)),                # each tile independent -> megacore OK
    )(x, lab, cents, delta2d)

    loss = jnp.sum(partials[:, 0]) / n
    delta_sp = delta_tiles[0, :n_delta]
    return loss, delta_sp


def _reference(pooled, cents, labels, delta_param):
    delta = jax.nn.softplus(delta_param)
    c = cents[labels]
    c = c / jnp.linalg.norm(c, axis=1, keepdims=True)
    d = delta[labels]
    euc = 1.0 - jnp.sum(c * pooled, axis=1)
    pos = jnp.where(euc > d, euc - d, 0.0)
    neg = jnp.where(euc < d, d - euc, 0.0)
    return pos.mean() + neg.mean(), delta


if __name__ == "__main__":
    key = jax.random.PRNGKey(0)
    k1, k2, k3, k4 = jax.random.split(key, 4)

    # small shapes consistent with the module (num_labels=10, feat_dim=32, batch=8)
    N, D, K = 8, 32, 10
    pooled = jax.random.normal(k1, (N, D), dtype=jnp.float32)
    cents = jax.random.normal(k2, (K, D), dtype=jnp.float32)
    labels = jax.random.randint(k3, (N,), 0, K)
    # self.delta = nn.Parameter(torch.ones(20)); nn.init.normal_(self.delta)
    delta_param = jax.random.normal(k4, (20,), dtype=jnp.float32)

    loss, delta_sp = boundary_loss(pooled, cents, labels, delta_param)
    jax.block_until_ready((loss, delta_sp))

    ref_loss, ref_delta = _reference(pooled, cents, labels, delta_param)
    assert jnp.allclose(loss, ref_loss, atol=1e-5, rtol=1e-5), (loss, ref_loss)
    assert jnp.allclose(delta_sp, ref_delta, atol=1e-5, rtol=1e-5)

    print("KERNEL_OK")
</pallas_src>

<mosaic_0001>
module attributes {stable_mosaic.version = 11 : i64} {
  func.func @_boundary_loss_kernel(%arg0: i32, %arg1: memref<8x128xf32, #tpu.memory_space<vmem>>, %arg2: memref<8x1xi32, #tpu.memory_space<vmem>>, %arg3: memref<128x128xf32, #tpu.memory_space<vmem>>, %arg4: memref<1x128xf32, #tpu.memory_space<vmem>>, %arg5: memref<1x128xf32, #tpu.memory_space<vmem>>, %arg6: memref<1x128xf32, #tpu.memory_space<vmem>>) attributes {dimension_semantics = [#tpu.dimension_semantics<parallel>], iteration_bounds = array<i64: 1>, scalar_prefetch = 0 : i64, scratch_operands = 0 : i64, tpu.core_type = #tpu.core_type<tc>, window_params = [{transform_indices = @transform_0, window_bounds = array<i64: 8, 128>}, {transform_indices = @transform_1, window_bounds = array<i64: 8, 1>}, {pipeline_mode = #tpu.pipeline_mode<synchronous>, transform_indices = @transform_2, window_bounds = array<i64: 128, 128>}, {pipeline_mode = #tpu.pipeline_mode<synchronous>, transform_indices = @transform_3, window_bounds = array<i64: 1, 128>}, {transform_indices = @transform_4, window_bounds = array<i64: 1, 128>}, {transform_indices = @transform_5, window_bounds = array<i64: 1, 128>}]} {
    %c0 = arith.constant 0 : index
    %c0_0 = arith.constant 0 : index
    %0 = vector.load %arg4[%c0, %c0_0] : memref<1x128xf32, #tpu.memory_space<vmem>>, vector<1x128xf32>
    %cst = arith.constant 0.000000e+00 : f32
    %1 = vector.broadcast %cst : f32 to vector<1x128xf32>
    %2 = arith.maximumf %0, %1 : vector<1x128xf32>
    %3 = math.absf %0 : vector<1x128xf32>
    %cst_1 = arith.constant 0.000000e+00 : f32
    %4 = vector.broadcast %cst_1 : f32 to vector<1x128xf32>
    %5 = arith.subf %4, %3 : vector<1x128xf32>
    %6 = math.exp %5 : vector<1x128xf32>
    %7 = math.log1p %6 : vector<1x128xf32>
    %8 = arith.addf %2, %7 : vector<1x128xf32>
    %c0_2 = arith.constant 0 : index
    %c0_3 = arith.constant 0 : index
    %9 = vector.load %arg6[%c0_2, %c0_3] : memref<1x128xf32, #tpu.memory_space<vmem>>, vector<1x128xf32>
    tpu.vector_store %arg6[%c0_2, %c0_3], %8 {strides = array<i32>} : memref<1x128xf32, #tpu.memory_space<vmem>>, vector<1x128xf32>,
    %c0_4 = arith.constant 0 : index
    %c0_5 = arith.constant 0 : index
    %10 = vector.load %arg3[%c0_4, %c0_5] : memref<128x128xf32, #tpu.memory_space<vmem>>, vector<128x128xf32>
    %11 = arith.mulf %10, %10 : vector<128x128xf32>
    %cst_6 = arith.constant dense<0.000000e+00> : vector<128xf32>
    %12 = vector.multi_reduction <add>, %11, %cst_6 [1] : vector<128x128xf32> to vector<128xf32>
    %13 = vector.shape_cast %12 : vector<128xf32> to vector<128x1xf32>
    %cst_7 = arith.constant 1.000000e-30 : f32
    %14 = vector.broadcast %cst_7 : f32 to vector<128x1xf32>
    %15 = arith.maximumf %13, %14 : vector<128x1xf32>
    %16 = math.rsqrt %15 : vector<128x1xf32>
    %17 = vector.broadcast %16 : vector<128x1xf32> to vector<128x128xf32>
    %18 = arith.mulf %10, %17 : vector<128x128xf32>
    %c0_8 = arith.constant 0 : index
    %c0_9 = arith.constant 0 : index
    %19 = vector.load %arg1[%c0_8, %c0_9] : memref<8x128xf32, #tpu.memory_space<vmem>>, vector<8x128xf32>
    "tpu.trace_start"() <{level = 10 : i32, message = "nd,kd->nk"}> : () -> ()
    %cst_10 = arith.constant dense<0.000000e+00> : vector<8x128xf32>
    %20 = tpu.matmul %19, %18, %cst_10 {dimension_numbers = #tpu.dot_dimension_numbers<[1], [1], [0], [0], [0, 0, 1, 0], [], []>} : vector<8x128xf32>, vector<128x128xf32>, vector<8x128xf32> -> vector<8x128xf32>
    "tpu.trace_stop"() : () -> ()
    %c0_11 = arith.constant 0 : index
    %c0_12 = arith.constant 0 : index
    %21 = vector.load %arg2[%c0_11, %c0_12] : memref<8x1xi32, #tpu.memory_space<vmem>>, vector<8x1xi32>
    %22 = tpu.iota {dimensions = array<i32: 1>} : vector<8x128xi32>
    %23 = vector.broadcast %21 : vector<8x1xi32> to vector<8x128xi32>
    %24 = arith.cmpi eq, %23, %22 : vector<8x128xi32>
    %25 = vector.broadcast %8 : vector<1x128xf32> to vector<8x128xf32>
    %26 = arith.addf %20, %25 : vector<8x128xf32>
    %cst_13 = arith.constant 0.000000e+00 : f32
    %27 = vector.broadcast %cst_13 : f32 to vector<8x128xf32>
    %28 = arith.select %24, %26, %27 : vector<8x128xi1>, vector<8x128xf32>
    %cst_14 = arith.constant dense<0.000000e+00> : vector<8xf32>
    %29 = vector.multi_reduction <add>, %28, %cst_14 [1] : vector<8x128xf32> to vector<8xf32>
    %30 = vector.shape_cast %29 : vector<8xf32> to vector<8x1xf32>
    %c8_i32 = arith.constant 8 : i32
    %31 = arith.muli %arg0, %c8_i32 : i32
    %32 = tpu.iota {dimensions = array<i32: 0>} : vector<8x1xi32>
    %33 = vector.broadcast %31 : i32 to vector<8x1xi32>
    %34 = arith.addi %33, %32 : vector<8x1xi32>
    %c8_i32_15 = arith.constant 8 : i32
    %35 = vector.broadcast %c8_i32_15 : i32 to vector<8x1xi32>
    %36 = arith.cmpi slt, %34, %35 : vector<8x1xi32>
    %cst_16 = arith.constant 1.000000e+00 : f32
    %37 = vector.broadcast %cst_16 : f32 to vector<8x1xf32>
    %38 = arith.subf %37, %30 : vector<8x1xf32>
    %39 = math.absf %38 : vector<8x1xf32>
    %cst_17 = arith.constant 0.000000e+00 : f32
    %40 = vector.broadcast %cst_17 : f32 to vector<8x1xf32>
    %41 = arith.select %36, %39, %40 : vector<8x1xi1>, vector<8x1xf32>
    %42 = vector.shape_cast %41 : vector<8x1xf32> to vector<1x8x1xf32>
    %cst_18 = arith.constant dense<0.000000e+00> : vector<1xf32>
    %43 = vector.multi_reduction <add>, %42, %cst_18 [1, 2] : vector<1x8x1xf32> to vector<1xf32>
    %44 = vector.shape_cast %43 : vector<1xf32> to vector<1x1x1xf32>
    %45 = vector.extract %44[0, 0, 0] : f32 from vector<1x1x1xf32>
    %46 = vector.broadcast %45 : f32 to vector<1x1xf32>
    %47 = vector.shape_cast %46 : vector<1x1xf32> to vector<1x1xf32>
    %48 = vector.broadcast %47 : vector<1x1xf32> to vector<1x128xf32>
    %c0_19 = arith.constant 0 : index
    %c0_20 = arith.constant 0 : index
    %49 = vector.load %arg5[%c0_19, %c0_20] : memref<1x128xf32, #tpu.memory_space<vmem>>, vector<1x128xf32>
    tpu.vector_store %arg5[%c0_19, %c0_20], %48 {strides = array<i32>} : memref<1x128xf32, #tpu.memory_space<vmem>>, vector<1x128xf32>,
    return
  }
  func.func @transform_0(%arg0: i32) -> (i32, i32) {
    %c0_i32 = arith.constant 0 : i32
    %c0_i32_0 = arith.constant 0 : i32
    return %arg0, %c0_i32 : i32, i32
  }
  func.func @transform_1(%arg0: i32) -> (i32, i32) {
    %c0_i32 = arith.constant 0 : i32
    %c0_i32_0 = arith.constant 0 : i32
    return %arg0, %c0_i32 : i32, i32
  }
  func.func @transform_2(%arg0: i32) -> (i32, i32) {
    %c0_i32 = arith.constant 0 : i32
    %c0_i32_0 = arith.constant 0 : i32
    %c0_i32_1 = arith.constant 0 : i32
    return %c0_i32, %c0_i32_0 : i32, i32
  }
  func.func @transform_3(%arg0: i32) -> (i32, i32) {
    %c0_i32 = arith.constant 0 : i32
    %c0_i32_0 = arith.constant 0 : i32
    %c0_i32_1 = arith.constant 0 : i32
    return %c0_i32, %c0_i32_0 : i32, i32
  }
  func.func @transform_4(%arg0: i32) -> (i32, i32) {
    %c0_i32 = arith.constant 0 : i32
    %c0_i32_0 = arith.constant 0 : i32
    return %arg0, %c0_i32 : i32, i32
  }
  func.func @transform_5(%arg0: i32) -> (i32, i32) {
    %c0_i32 = arith.constant 0 : i32
    %c0_i32_0 = arith.constant 0 : i32
    return %arg0, %c0_i32 : i32, i32
  }
}

</mosaic_0001>

<llo_original>
// kernel: tpu_custom_call.1
$region0: #{tpu_custom_call.1}
  #allocation0 [shape = 'u32[]', space=smem, size = 0x4, offset = 0x4, fixed_abs, tag = 'smem constant byte address 0x4 - core index']
  #allocation1 [shape = 'u32[72,128]{1,0:T(1,128)}', space=vmem, size = 0x9000, scoped, tag = 'internal scratch']
  %s0 = inlined_call_operand.vmem [shape: f32[8,128], index: 0, kind: input, shape index: {}]
  %s1 = inlined_call_operand.vmem [shape: s32[8,1], index: 1, kind: input, shape index: {}]
  %s2 = inlined_call_operand.hbm [shape: f32[128,128], index: 2, kind: input, shape index: {}]
  %s3 = inlined_call_operand.vmem [shape: f32[1,128], index: 3, kind: input, shape index: {}]
  %s4 = inlined_call_operand.hbm [shape: f32[1,128], index: 4, kind: output, shape index: {0}]
  %s5 = inlined_call_operand.hbm [shape: f32[1,128], index: 5, kind: output, shape index: {1}]
  %6 = xla_tuple %s4, %s5
  %s7 = sld [smem:[#allocation0]]
  $region38: #{tpu_custom_call.1} parent=0
    _
  %s9 = ssub.s32 1, %s7
  %s10 = scalar_select 0, %s9, %s7
  $region1: #{tpu_custom_call.1} parent=0
    #allocation2 [shape = 'u8[65536]{0}', space=vmem, size = 0x10000, scoped, tag = 'input window, operand 2, single buffered']
    #allocation3 [shape = 's32[1]{0}', space=sflag, size = 0x4, scoped, tag = 'scoped memory for tpu_custom_call.1']
    #allocation4 [shape = 's32[1]{0}', space=sflag, size = 0x4, scoped, tag = 'scoped memory for tpu_custom_call.1']
    #allocation5 [shape = 'u8[512]{0}', space=vmem, size = 0x400, scoped, tag = 'output window, operand 0, single buffered']
    #allocation6 [shape = 'u8[512]{0}', space=vmem, size = 0x400, scoped, tag = 'output window, operand 1, single buffered']
    #allocation7 [shape = 's32[1]{0}', space=sflag, size = 0x4, scoped, tag = 'scoped memory for tpu_custom_call.1']
    %11 = vsyncpa [#allocation3], 0
    %12 = vsyncpa [#allocation4], 0
    %13 = vsyncpa [#allocation7], 0
    // Predicated region
    $region2: #{tpu_custom_call.1} parent=1 // pred_check
      _
    $region3: #{tpu_custom_call.1} parent=1 // pred_check_branch
      %15 = sbr.rel (0) target = $region5
    $region4: #{tpu_custom_call.1} parent=1 // pred_region
      _
    $region5: #{tpu_custom_call.1} parent=1 // pred_fallthru
      _
    // Predicated region
    $region6: #{tpu_custom_call.1} parent=1 // pred_check
      _
    $region7: #{tpu_custom_call.1} parent=1 // pred_check_branch
      %17 = sbr.rel (0) target = $region9
    $region8: #{tpu_custom_call.1} parent=1 // pred_region
      _
    $region9: #{tpu_custom_call.1} parent=1 // pred_fallthru
      _
    // Predicated region
    $region10: #{tpu_custom_call.1} parent=1 // pred_check
      _
    $region11: #{tpu_custom_call.1} parent=1 // pred_check_branch
      %19 = sbr.rel (0) target = $region13
    $region12: #{tpu_custom_call.1} parent=1 // pred_region
      %21 = vsyncadd [#allocation3], 0
      %s22 = sshll.u32 %s2, 4
      %s23 = int_to_ptr.hbm [resolvable:$true] %s22
      %s24 = sshll.u32 [#allocation2], 4
      %s25 = int_to_ptr.vmem [resolvable:$true] %s24
      %30 = dma.hbm_to_vmem [thread:$0]  %s23, 2048, %s25, [#allocation3], 128, 128, 8
    $region13: #{tpu_custom_call.1} parent=1 // pred_fallthru
      _
    // Predicated region
    $region14: #{tpu_custom_call.1} parent=1 // pred_check
      _
    $region15: #{tpu_custom_call.1} parent=1 // pred_check_branch
      %32 = sbr.rel (0) target = $region17
    $region16: #{tpu_custom_call.1} parent=1 // pred_region
      _
    $region17: #{tpu_custom_call.1} parent=1 // pred_fallthru
      _
    // Predicated region
    $region18: #{tpu_custom_call.1} parent=1 // pred_check
      _
    $region19: #{tpu_custom_call.1} parent=1 // pred_check_branch
      %34 = sbr.rel (0) target = $region21
    $region20: #{tpu_custom_call.1} parent=1 // pred_region
      %36 = dma.done [#allocation3], 2048
    $region21: #{tpu_custom_call.1} parent=1 // pred_fallthru
      _
    %v37 = vld [vmem:[%s3] sm:$0x1]
    %v38 = vmax.f32 %v37, 0.0
    %v39 = vand.u32 2147483647, %v37
    %v40 = vsub.f32 0.0, %v39
    %v41 = vmul.f32 %v40, 1.442695
    %v42 = vpow.pop %v41
    %v43 = vadd.f32 %v42, 1.0
    %v44 = vlog2.pop %v43
    %v45 = vmul.f32 %v44, 0.6931472
    %v46 = vmul.f32 -0.5, %v42
    %v47 = vadd.f32 %v46, 1.0
    %v48 = vmul.f32 %v47, %v42
    %v49 = vand.u32 2147483647, %v42
    %vm50 = vcmp.lt.f32.partialorder %v49, 0.0004427343
    %v51 = vsel %vm50, %v48, %v45
    %v52 = vadd.f32 %v38, %v51
    %53 = vst [vmem:[#allocation6] sm:$0x1] %v52
    %v54 = vld [vmem:[#allocation2] sm:$0xff]
    %v55 = vld [vmem:[#allocation2 + $0x8] sm:$0xff]
    %v56 = vld [vmem:[#allocation2 + $0x10] sm:$0xff]
    %v57 = vld [vmem:[#allocation2 + $0x18] sm:$0xff]
    %v58 = vld [vmem:[#allocation2 + $0x20] sm:$0xff]
    %v59 = vld [vmem:[#allocation2 + $0x28] sm:$0xff]
    %v60 = vld [vmem:[#allocation2 + $0x30] sm:$0xff]
    %v61 = vld [vmem:[#allocation2 + $0x38] sm:$0xff]
    %v62 = vld [vmem:[#allocation2 + $0x40] sm:$0xff]
    %v63 = vld [vmem:[#allocation2 + $0x48] sm:$0xff]
    %v64 = vld [vmem:[#allocation2 + $0x50] sm:$0xff]
    %v65 = vld [vmem:[#allocation2 + $0x58] sm:$0xff]
    %v66 = vld [vmem:[#allocation2 + $0x60] sm:$0xff]
    %v67 = vld [vmem:[#allocation2 + $0x68] sm:$0xff]
    %v68 = vld [vmem:[#allocation2 + $0x70] sm:$0xff]
    %v69 = vld [vmem:[#allocation2 + $0x78] sm:$0xff]
    %v70 = vmul.f32 %v54, %v54
    %v71 = vmul.f32 %v55, %v55
    %v72 = vmul.f32 %v56, %v56
    %v73 = vmul.f32 %v57, %v57
    %v74 = vmul.f32 %v58, %v58
    %v75 = vmul.f32 %v59, %v59
    %v76 = vmul.f32 %v60, %v60
    %v77 = vmul.f32 %v61, %v61
    %v78 = vmul.f32 %v62, %v62
    %v79 = vmul.f32 %v63, %v63
    %v80 = vmul.f32 %v64, %v64
    %v81 = vmul.f32 %v65, %v65
    %v82 = vmul.f32 %v66, %v66
    %v83 = vmul.f32 %v67, %v67
    %v84 = vmul.f32 %v68, %v68
    %v85 = vmul.f32 %v69, %v69
    %86 = vadd.xlane.f32.xlu0 %v70
    %v87 = vpop.xlane.xlu0 %86
    %88 = vadd.xlane.f32.xlu0 %v71
    %v89 = vpop.xlane.xlu0 %88
    %90 = vadd.xlane.f32.xlu0 %v72
    %v91 = vpop.xlane.xlu0 %90
    %92 = vadd.xlane.f32.xlu0 %v73
    %v93 = vpop.xlane.xlu0 %92
    %94 = vadd.xlane.f32.xlu0 %v74
    %v95 = vpop.xlane.xlu0 %94
    %96 = vadd.xlane.f32.xlu0 %v75
    %v97 = vpop.xlane.xlu0 %96
    %98 = vadd.xlane.f32.xlu0 %v76
    %v99 = vpop.xlane.xlu0 %98
    %100 = vadd.xlane.f32.xlu0 %v77
    %v101 = vpop.xlane.xlu0 %100
    %102 = vadd.xlane.f32.xlu0 %v78
    %v103 = vpop.xlane.xlu0 %102
    %104 = vadd.xlane.f32.xlu0 %v79
    %v105 = vpop.xlane.xlu0 %104
    %106 = vadd.xlane.f32.xlu0 %v80
    %v107 = vpop.xlane.xlu0 %106
    %108 = vadd.xlane.f32.xlu0 %v81
    %v109 = vpop.xlane.xlu0 %108
    %110 = vadd.xlane.f32.xlu0 %v82
    %v111 = vpop.xlane.xlu0 %110
    %112 = vadd.xlane.f32.xlu0 %v83
    %v113 = vpop.xlane.xlu0 %112
    %114 = vadd.xlane.f32.xlu0 %v84
    %v115 = vpop.xlane.xlu0 %114
    %116 = vadd.xlane.f32.xlu0 %v85
    %v117 = vpop.xlane.xlu0 %116
    %v118 = vmax.f32 %v87, 1e-30
    %v119 = vmax.f32 %v89, 1e-30
    %v120 = vmax.f32 %v91, 1e-30
    %v121 = vmax.f32 %v93, 1e-30
    %v122 = vmax.f32 %v95, 1e-30
    %v123 = vmax.f32 %v97, 1e-30
    %v124 = vmax.f32 %v99, 1e-30
    %v125 = vmax.f32 %v101, 1e-30
    %v126 = vmax.f32 %v103, 1e-30
    %v127 = vmax.f32 %v105, 1e-30
    %v128 = vmax.f32 %v107, 1e-30
    %v129 = vmax.f32 %v109, 1e-30
    %v130 = vmax.f32 %v111, 1e-30
    %v131 = vmax.f32 %v113, 1e-30
    %v132 = vmax.f32 %v115, 1e-30
    %v133 = vmax.f32 %v117, 1e-30
    %v134 = vrsqrt.pop %v118
    %v135 = vmul.f32 %v134, %v118
    %v136 = vmul.f32 %v135, %v134
    %v137 = vmul.f32 0.5, %v136
    %v138 = vsub.f32 1.5, %v137
    %v139 = vmul.f32 %v134, %v138
    %vm140 = vweird.f32 %v118
    %vm141 = vweird.f32 %v134
    %vm142 = vmor %vm140, %vm141
    %v143 = vsel %vm142, %v134, %v139
    %v144 = vrsqrt.pop %v119
    %v145 = vmul.f32 %v144, %v119
    %v146 = vmul.f32 %v145, %v144
    %v147 = vmul.f32 0.5, %v146
    %v148 = vsub.f32 1.5, %v147
    %v149 = vmul.f32 %v144, %v148
    %vm150 = vweird.f32 %v119
    %vm151 = vweird.f32 %v144
    %vm152 = vmor %vm150, %vm151
    %v153 = vsel %vm152, %v144, %v149
    %v154 = vrsqrt.pop %v120
    %v155 = vmul.f32 %v154, %v120
    %v156 = vmul.f32 %v155, %v154
    %v157 = vmul.f32 0.5, %v156
    %v158 = vsub.f32 1.5, %v157
    %v159 = vmul.f32 %v154, %v158
    %vm160 = vweird.f32 %v120
    %vm161 = vweird.f32 %v154
    %vm162 = vmor %vm160, %vm161
    %v163 = vsel %vm162, %v154, %v159
    %v164 = vrsqrt.pop %v121
    %v165 = vmul.f32 %v164, %v121
    %v166 = vmul.f32 %v165, %v164
    %v167 = vmul.f32 0.5, %v166
    %v168 = vsub.f32 1.5, %v167
    %v169 = vmul.f32 %v164, %v168
    %vm170 = vweird.f32 %v121
    %vm171 = vweird.f32 %v164
    %vm172 = vmor %vm170, %vm171
    %v173 = vsel %vm172, %v164, %v169
    %v174 = vrsqrt.pop %v122
    %v175 = vmul.f32 %v174, %v122
    %v176 = vmul.f32 %v175, %v174
    %v177 = vmul.f32 0.5, %v176
    %v178 = vsub.f32 1.5, %v177
    %v179 = vmul.f32 %v174, %v178
    %vm180 = vweird.f32 %v122
    %vm181 = vweird.f32 %v174
    %vm182 = vmor %vm180, %vm181
    %v183 = vsel %vm182, %v174, %v179
    %v184 = vrsqrt.pop %v123
    %v185 = vmul.f32 %v184, %v123
    %v186 = vmul.f32 %v185, %v184
    %v187 = vmul.f32 0.5, %v186
    %v188 = vsub.f32 1.5, %v187
    %v189 = vmul.f32 %v184, %v188
    %vm190 = vweird.f32 %v123
    %vm191 = vweird.f32 %v184
    %vm192 = vmor %vm190, %vm191
    %v193 = vsel %vm192, %v184, %v189
    %v194 = vrsqrt.pop %v124
    %v195 = vmul.f32 %v194, %v124
    %v196 = vmul.f32 %v195, %v194
    %v197 = vmul.f32 0.5, %v196
    %v198 = vsub.f32 1.5, %v197
    %v199 = vmul.f32 %v194, %v198
    %vm200 = vweird.f32 %v124
    %vm201 = vweird.f32 %v194
    %vm202 = vmor %vm200, %vm201
    %v203 = vsel %vm202, %v194, %v199
    %v204 = vrsqrt.pop %v125
    %v205 = vmul.f32 %v204, %v125
    %v206 = vmul.f32 %v205, %v204
    %v207 = vmul.f32 0.5, %v206
    %v208 = vsub.f32 1.5, %v207
    %v209 = vmul.f32 %v204, %v208
    %vm210 = vweird.f32 %v125
    %vm211 = vweird.f32 %v204
    %vm212 = vmor %vm210, %vm211
    %v213 = vsel %vm212, %v204, %v209
    %v214 = vrsqrt.pop %v126
    %v215 = vmul.f32 %v214, %v126
    %v216 = vmul.f32 %v215, %v214
    %v217 = vmul.f32 0.5, %v216
    %v218 = vsub.f32 1.5, %v217
    %v219 = vmul.f32 %v214, %v218
    %vm220 = vweird.f32 %v126
    %vm221 = vweird.f32 %v214
    %vm222 = vmor %vm220, %vm221
    %v223 = vsel %vm222, %v214, %v219
    %v224 = vrsqrt.pop %v127
    %v225 = vmul.f32 %v224, %v127
    %v226 = vmul.f32 %v225, %v224
    %v227 = vmul.f32 0.5, %v226
    %v228 = vsub.f32 1.5, %v227
    %v229 = vmul.f32 %v224, %v228
    %vm230 = vweird.f32 %v127
    %vm231 = vweird.f32 %v224
    %vm232 = vmor %vm230, %vm231
    %v233 = vsel %vm232, %v224, %v229
    %v234 = vrsqrt.pop %v128
    %v235 = vmul.f32 %v234, %v128
    %v236 = vmul.f32 %v235, %v234
    %v237 = vmul.f32 0.5, %v236
    %v238 = vsub.f32 1.5, %v237
    %v239 = vmul.f32 %v234, %v238
    %vm240 = vweird.f32 %v128
    %vm241 = vweird.f32 %v234
    %vm242 = vmor %vm240, %vm241
    %v243 = vsel %vm242, %v234, %v239
    %v244 = vrsqrt.pop %v129
    %v245 = vmul.f32 %v244, %v129
    %v246 = vmul.f32 %v245, %v244
    %v247 = vmul.f32 0.5, %v246
    %v248 = vsub.f32 1.5, %v247
    %v249 = vmul.f32 %v244, %v248
    %vm250 = vweird.f32 %v129
    %vm251 = vweird.f32 %v244
    %vm252 = vmor %vm250, %vm251
    %v253 = vsel %vm252, %v244, %v249
    %v254 = vrsqrt.pop %v130
    %v255 = vmul.f32 %v254, %v130
    %v256 = vmul.f32 %v255, %v254
    %v257 = vmul.f32 0.5, %v256
    %v258 = vsub.f32 1.5, %v257
    %v259 = vmul.f32 %v254, %v258
    %vm260 = vweird.f32 %v130
    %vm261 = vweird.f32 %v254
    %vm262 = vmor %vm260, %vm261
    %v263 = vsel %vm262, %v254, %v259
    %v264 = vrsqrt.pop %v131
    %v265 = vmul.f32 %v264, %v131
    %v266 = vmul.f32 %v265, %v264
    %v267 = vmul.f32 0.5, %v266
    %v268 = vsub.f32 1.5, %v267
    %v269 = vmul.f32 %v264, %v268
    %vm270 = vweird.f32 %v131
    %vm271 = vweird.f32 %v264
    %vm272 = vmor %vm270, %vm271
    %v273 = vsel %vm272, %v264, %v269
    %v274 = vrsqrt.pop %v132
    %v275 = vmul.f32 %v274, %v132
    %v276 = vmul.f32 %v275, %v274
    %v277 = vmul.f32 0.5, %v276
    %v278 = vsub.f32 1.5, %v277
    %v279 = vmul.f32 %v274, %v278
    %vm280 = vweird.f32 %v132
    %vm281 = vweird.f32 %v274
    %vm282 = vmor %vm280, %vm281
    %v283 = vsel %vm282, %v274, %v279
    %v284 = vrsqrt.pop %v133
    %v285 = vmul.f32 %v284, %v133
    %v286 = vmul.f32 %v285, %v284
    %v287 = vmul.f32 0.5, %v286
    %v288 = vsub.f32 1.5, %v287
    %v289 = vmul.f32 %v284, %v288
    %vm290 = vweird.f32 %v133
    %vm291 = vweird.f32 %v284
    %vm292 = vmor %vm290, %vm291
    %v293 = vsel %vm292, %v284, %v289
    %v294 = vmul.f32 %v54, %v143
    %v295 = vmul.f32 %v55, %v153
    %v296 = vmul.f32 %v56, %v163
    %v297 = vmul.f32 %v57, %v173
    %v298 = vmul.f32 %v58, %v183
    %v299 = vmul.f32 %v59, %v193
    %v300 = vmul.f32 %v60, %v203
    %v301 = vmul.f32 %v61, %v213
    %v302 = vmul.f32 %v62, %v223
    %v303 = vmul.f32 %v63, %v233
    %v304 = vmul.f32 %v64, %v243
    %v305 = vmul.f32 %v65, %v253
    %v306 = vmul.f32 %v66, %v263
    %v307 = vmul.f32 %v67, %v273
    %v308 = vmul.f32 %v68, %v283
    %v309 = vmul.f32 %v69, %v293
    %v310 = vld [vmem:[%s0] sm:$0xff]
    %v311 = vld [vmem:[%s1] sm:$0xff]
    %v312 = vlaneseq
    %v313 = vand.u32 %v312, 127
    %314 = vset.pattern.permute.xlu0 0
    %315 = vperm.xlu0 %314, %v311
    %v316 = vpop.permute.xlu0 %315
    %vm317 = vcmp.eq.s32.totalorder %v316, %v313
    %v319 = vperm.slane %v52, 0
    %321 = vmatpush.xpose.msra.mxu0 %v309
    %322 = vmatpush.xpose.msra.mxu0 %v308
    %323 = vmatpush.xpose.msra.mxu0 %v307
    %324 = vmatpush.xpose.msra.mxu0 %v306
    %325 = vmatpush.xpose.msra.mxu0 %v305
    %326 = vmatpush.xpose.msra.mxu0 %v304
    %327 = vmatpush.xpose.msra.mxu0 %v303
    %328 = vmatpush.xpose.msra.mxu0 %v302
    %329 = vmatpush.xpose.msra.mxu0 %v301
    %330 = vmatpush.xpose.msra.mxu0 %v300
    %331 = vmatpush.xpose.msra.mxu0 %v299
    %332 = vmatpush.xpose.msra.mxu0 %v298
    %333 = vmatpush.xpose.msra.mxu0 %v297
    %334 = vmatpush.xpose.msra.mxu0 %v296
    %335 = vmatpush.xpose.msra.mxu0 %v295
    %336 = vmatpush.xpose.msra.mxu0 %v294
    %337 = vmatmul.f32.gmra.mxu0 %v310
    %v338 = vpop.f32.mrf.mxu0
    %v339 = vadd.f32 %v319, %v338
    %340 = vdwg.mxu0
    %v341 = vsel %vm317, %v339, 0.0
    %342 = vadd.xlane.f32.xlu0 %v341
    %v343 = vpop.xlane.xlu0 %342
    %s344 = smul.u32 0, 8
    %v345 = vlaneseq
    %v346 = vshrl.u32 %v345, 7
    %v347 = vstv %s344
    %v348 = vadd.s32 %v347, %v346
    %vm349 = vcmp.lt.s32.totalorder %v348, 8
    %v350 = vsub.f32 1.0, %v343
    %v351 = vand.u32 2147483647, %v350
    %v352 = vsel %vm349, %v351, 0.0
    %vm353 = vcmask 7168
    %v354 = vsel %vm353, %v352, 0.0
    %355 = vadd.xlane.f32.xlu0 %v354
    %v356 = vpop.xlane.xlu0 %355
    %v357 = vrot.slane %v356, 4
    %v358 = vadd.f32 %v356, %v357
    %v359 = vrot.slane %v358, 2
    %v360 = vadd.f32 %v358, %v359
    %v361 = vrot.slane %v360, 1
    %v362 = vadd.f32 %v360, %v361
    %s363 = vtos %v362
    %v364 = vstv %s363
    %365 = vst [vmem:[#allocation5] sm:$0x1] %v364
    // Predicated region
    $region22: #{tpu_custom_call.1} parent=1 // pred_check
      _
    $region23: #{tpu_custom_call.1} parent=1 // pred_check_branch
      %367 = sbr.rel (0) target = $region25
    $region24: #{tpu_custom_call.1} parent=1 // pred_region
      %369 = vsyncadd [#allocation4], 0
      %s371 = sshll.u32 [#allocation5], 4
      %s372 = int_to_ptr.vmem [resolvable:$true] %s371
      %s373 = sshll.u32 %s4, 4
      %s374 = int_to_ptr.hbm [resolvable:$true] %s373
      %376 = dma.vmem_to_hbm [thread:$0]  %s372, 16, %s374, [#allocation4]
    $region25: #{tpu_custom_call.1} parent=1 // pred_fallthru
      _
    // Predicated region
    $region26: #{tpu_custom_call.1} parent=1 // pred_check
      _
    $region27: #{tpu_custom_call.1} parent=1 // pred_check_branch
      %378 = sbr.rel (0) target = $region29
    $region28: #{tpu_custom_call.1} parent=1 // pred_region
      %380 = vsyncadd [#allocation7], 0
      %s382 = sshll.u32 [#allocation6], 4
      %s383 = int_to_ptr.vmem [resolvable:$true] %s382
      %s384 = sshll.u32 %s5, 4
      %s385 = int_to_ptr.hbm [resolvable:$true] %s384
      %387 = dma.vmem_to_hbm [thread:$0]  %s383, 16, %s385, [#allocation7]
    $region29: #{tpu_custom_call.1} parent=1 // pred_fallthru
      _
    // Predicated region
    $region30: #{tpu_custom_call.1} parent=1 // pred_check
      _
    $region31: #{tpu_custom_call.1} parent=1 // pred_check_branch
      %389 = sbr.rel (0) target = $region33
    $region32: #{tpu_custom_call.1} parent=1 // pred_region
      %391 = dma.done [#allocation4], 16
    $region33: #{tpu_custom_call.1} parent=1 // pred_fallthru
      _
    // Predicated region
    $region34: #{tpu_custom_call.1} parent=1 // pred_check
      _
    $region35: #{tpu_custom_call.1} parent=1 // pred_check_branch
      %393 = sbr.rel (0) target = $region37
    $region36: #{tpu_custom_call.1} parent=1 // pred_region
      %395 = dma.done [#allocation7], 16
    $region37: #{tpu_custom_call.1} parent=1 // pred_fallthru
      _
    %396 = vsyncpa [#allocation3], 1
    %397 = vsyncpa [#allocation4], 1
    %398 = vsyncpa [#allocation7], 1

</llo_original>
